<compile_context>
chip_gen: v5e
topology: v5e:2x2
jax: 0.10.0
libtpu: 0.0.40
codegen_flags: <defaults>
</compile_context>

<pallas_src>
import functools

import jax
import jax.numpy as jnp
from jax.experimental import pallas as pl
from jax.experimental.pallas import tpu as pltpu

# Full f32 matmul precision so the Pallas kernels and the pure-JAX reference agree
# regardless of the backend's default MXU pass configuration.
jax.config.update("jax_default_matmul_precision", "highest")


def _input_proj_kernel(x_ref, w_ref, b_ref, o_ref):
    """o = x @ w + b  (input gates for both GRU directions, f32 accumulation)."""
    x = x_ref[...].astype(jnp.float32)
    o_ref[...] = jnp.dot(x, w_ref[...], preferred_element_type=jnp.float32) + b_ref[...]


def _bigru_scan_kernel(len_ref, gxf_ref, gxb_ref, whf_ref, whb_ref, bhf_ref, bhb_ref,
                       outf_ref, outb_ref, hf_ref, hb_ref, *, hidden):
    """One bidirectional GRU step per grid iteration (forward at t, backward at T-1-t)."""
    t = pl.program_id(0)
    num_t = pl.num_programs(0)
    H = hidden

    @pl.when(t == 0)
    def _():
        hf_ref[...] = jnp.zeros_like(hf_ref)
        hb_ref[...] = jnp.zeros_like(hb_ref)

    lens = len_ref[...]                                    # (N, 1) int32

    def gru_cell(gi, h_prev, wh_t_ref, bh_ref):
        # gi already contains W_ih x + b_ih (precomputed in pass 1).
        gh = jnp.dot(h_prev, wh_t_ref[...], preferred_element_type=jnp.float32) + bh_ref[...]
        r = jax.nn.sigmoid(gi[:, :H] + gh[:, :H])
        z = jax.nn.sigmoid(gi[:, H:2 * H] + gh[:, H:2 * H])
        n = jnp.tanh(gi[:, 2 * H:] + r * gh[:, 2 * H:])     # b_hn stays inside r * (.)
        return (1.0 - z) * n + z * h_prev

    # ---- forward direction: time index t ----
    valid_f = lens > t                                     # (N, 1) bool
    h_prev_f = hf_ref[...]
    h_new_f = gru_cell(gxf_ref[0].astype(jnp.float32), h_prev_f, whf_ref, bhf_ref)
    h_upd_f = jnp.where(valid_f, h_new_f, h_prev_f)
    hf_ref[...] = h_upd_f
    outf_ref[...] = jnp.where(valid_f, h_upd_f, 0.0)[None, :, :]

    # ---- backward direction: time index T - 1 - t ----
    tb = num_t - 1 - t
    valid_b = lens > tb
    h_prev_b = hb_ref[...]
    h_new_b = gru_cell(gxb_ref[0].astype(jnp.float32), h_prev_b, whb_ref, bhb_ref)
    h_upd_b = jnp.where(valid_b, h_new_b, h_prev_b)
    hb_ref[...] = h_upd_b
    outb_ref[...] = jnp.where(valid_b, h_upd_b, 0.0)[None, :, :]


def gru_block(x, x_length,
              w_ih_f, w_hh_f, b_ih_f, b_hh_f,
              w_ih_b, w_hh_b, b_ih_b, b_hh_b):
    """Bidirectional single-layer GRU with length masking; returns (y, x_length).

    y has shape [N, T, H] with padded timesteps zeroed.
    """
    N, T, I = x.shape
    H = w_hh_f.shape[1]
    G3, G6 = 3 * H, 6 * H

    # ---------------- pass 1: fused input projections for both directions ----------------
    x_tm = jnp.transpose(x, (1, 0, 2)).reshape(T * N, I)   # time-major rows
    R = T * N
    R_pad = ((R + 7) // 8) * 8                             # keep row tiling legal for any T*N
    if R_pad != R:
        x_tm = jnp.pad(x_tm, ((0, R_pad - R), (0, 0)))

    w_cat = jnp.concatenate([w_ih_f, w_ih_b], axis=0).T.astype(jnp.float32)     # (I, 6H)
    b_cat = jnp.concatenate([b_ih_f, b_ih_b], axis=0)[None, :].astype(jnp.float32)

    # Row tile: largest multiple-of-8 divisor of R_pad keeping blocks around <=2 MiB, so
    # double-buffered in/out tiles stay comfortably inside VMEM on v7x (64 MiB) as well.
    bytes_per_row = 4 * max(I, G6)
    cap_rows = max(8, min(R_pad, (2 << 20) // bytes_per_row))
    tr = 8
    while tr * 2 <= cap_rows and R_pad % (tr * 2) == 0:
        tr *= 2

    # TODO(synk): for very large input_size / hidden_size the resident (I, 6H) weight
    # block would need an extra K/N tiling grid axis; fine for the shapes used here.
    gx = pl.pallas_call(
        _input_proj_kernel,
        out_shape=jax.ShapeDtypeStruct((R_pad, G6), jnp.float32),
        grid_spec=pltpu.PrefetchScalarGridSpec(
            num_scalar_prefetch=0,
            grid=(R_pad // tr,),
            in_specs=[
                pl.BlockSpec((tr, I), lambda i: (i, 0)),
                pl.BlockSpec((I, G6), lambda i: (0, 0)),
                pl.BlockSpec((1, G6), lambda i: (0, 0)),
            ],
            out_specs=pl.BlockSpec((tr, G6), lambda i: (i, 0)),
        ),
        compiler_params=pltpu.CompilerParams(dimension_semantics=("parallel",)),
    )(x_tm, w_cat, b_cat)

    gx = gx[:R].reshape(T, N, G6)
    gx_f = gx[:, :, :G3]
    gx_b = gx[:, :, G3:]

    # ---------------- pass 2: sequential bidirectional scan over time ----------------
    wh_f_t = w_hh_f.T.astype(jnp.float32)                  # (H, 3H), resident across grid
    wh_b_t = w_hh_b.T.astype(jnp.float32)
    bh_f = b_hh_f[None, :].astype(jnp.float32)             # (1, 3H)
    bh_b = b_hh_b[None, :].astype(jnp.float32)
    lens2d = x_length.astype(jnp.int32).reshape(N, 1)

    out_f, out_b = pl.pallas_call(
        functools.partial(_bigru_scan_kernel, hidden=H),
        out_shape=(jax.ShapeDtypeStruct((T, N, H), jnp.float32),
                   jax.ShapeDtypeStruct((T, N, H), jnp.float32)),
        grid_spec=pltpu.PrefetchScalarGridSpec(
            num_scalar_prefetch=0,
            grid=(T,),
            in_specs=[
                pl.BlockSpec((N, 1), lambda t: (0, 0)),                  # lengths
                pl.BlockSpec((1, N, G3), lambda t: (t, 0, 0)),           # fwd gates @ t
                pl.BlockSpec((1, N, G3), lambda t: (T - 1 - t, 0, 0)),   # bwd gates @ T-1-t
                pl.BlockSpec((H, G3), lambda t: (0, 0)),                 # W_hh fwd^T
                pl.BlockSpec((H, G3), lambda t: (0, 0)),                 # W_hh bwd^T
                pl.BlockSpec((1, G3), lambda t: (0, 0)),                 # b_hh fwd
                pl.BlockSpec((1, G3), lambda t: (0, 0)),                 # b_hh bwd
            ],
            out_specs=(pl.BlockSpec((1, N, H), lambda t: (t, 0, 0)),
                       pl.BlockSpec((1, N, H), lambda t: (T - 1 - t, 0, 0))),
            scratch_shapes=[pltpu.VMEM((N, H), jnp.float32),
                            pltpu.VMEM((N, H), jnp.float32)],
        ),
        compiler_params=pltpu.CompilerParams(dimension_semantics=("arbitrary",)),
    )(lens2d, gx_f, gx_b, wh_f_t, wh_b_t, bh_f, bh_b)

    # Bidirectional merge (x[..., :H] + x[..., H:]) and back to batch-major layout.
    y = jnp.transpose(out_f + out_b, (1, 0, 2)).astype(x.dtype)
    # TODO(synk): pad_packed_sequence truncates the output to max(x_length); we return
    # the full T with zeroed padding (identical when max(x_length) == T, as tested).
    return y, x_length


def _gru_block_reference(x, x_length, w_ih_f, w_hh_f, b_ih_f, b_hh_f,
                         w_ih_b, w_hh_b, b_ih_b, b_hh_b):
    """Pure-JAX reference for the packed bidirectional GRU forward."""
    N, T, I = x.shape
    H = w_hh_f.shape[1]
    xf = x.astype(jnp.float32)
    lens = x_length.astype(jnp.int32)

    def run_direction(w_ih, w_hh, b_ih, b_hh, reverse):
        def step(h, inp):
            x_t, t = inp
            gi = x_t @ w_ih.T + b_ih
            gh = h @ w_hh.T + b_hh
            r = jax.nn.sigmoid(gi[:, :H] + gh[:, :H])
            z = jax.nn.sigmoid(gi[:, H:2 * H] + gh[:, H:2 * H])
            n = jnp.tanh(gi[:, 2 * H:] + r * gh[:, 2 * H:])
            h_new = (1.0 - z) * n + z * h
            valid = lens[:, None] > t
            h_upd = jnp.where(valid, h_new, h)
            return h_upd, jnp.where(valid, h_upd, 0.0)

        xs = jnp.transpose(xf, (1, 0, 2))
        ts = jnp.arange(T, dtype=jnp.int32)
        if reverse:
            xs, ts = xs[::-1], ts[::-1]
        _, outs = jax.lax.scan(step, jnp.zeros((N, H), jnp.float32), (xs, ts))
        if reverse:
            outs = outs[::-1]
        return outs

    out_f = run_direction(w_ih_f, w_hh_f, b_ih_f, b_hh_f, False)
    out_b = run_direction(w_ih_b, w_hh_b, b_ih_b, b_hh_b, True)
    y = jnp.transpose(out_f + out_b, (1, 0, 2)).astype(x.dtype)
    return y, x_length


if __name__ == "__main__":
    # Small shapes consistent with the module: batch=2, seq=8, input_size=32, hidden=32.
    N, T, I, H = 2, 8, 32, 32
    key = jax.random.PRNGKey(0)
    keys = jax.random.split(key, 9)
    bound = 1.0 / (H ** 0.5)   # nn.GRU default init range

    def uni(k, shape):
        return jax.random.uniform(k, shape, jnp.float32, -bound, bound)

    x = jax.random.normal(keys[0], (N, T, I), dtype=jnp.float32)
    w_ih_f, w_hh_f = uni(keys[1], (3 * H, I)), uni(keys[2], (3 * H, H))
    b_ih_f, b_hh_f = uni(keys[3], (3 * H,)), uni(keys[4], (3 * H,))
    w_ih_b, w_hh_b = uni(keys[5], (3 * H, I)), uni(keys[6], (3 * H, H))
    b_ih_b, b_hh_b = uni(keys[7], (3 * H,)), uni(keys[8], (3 * H,))
    # Variable lengths; max length == T so the padded output length matches PyTorch's.
    x_length = jnp.array([T, 5], dtype=jnp.int32)

    y, y_len = gru_block(x, x_length, w_ih_f, w_hh_f, b_ih_f, b_hh_f,
                         w_ih_b, w_hh_b, b_ih_b, b_hh_b)
    jax.block_until_ready(y)
    jax.block_until_ready(y_len)

    y_ref, _ = _gru_block_reference(x, x_length, w_ih_f, w_hh_f, b_ih_f, b_hh_f,
                                    w_ih_b, w_hh_b, b_ih_b, b_hh_b)
    if y.shape != (N, T, H) or not jnp.array_equal(y_len, x_length):
        raise AssertionError("output shape / length passthrough mismatch")
    if not jnp.allclose(y, y_ref, atol=1e-4, rtol=1e-4):
        raise AssertionError("Pallas GRUBlock mismatch vs reference")

    print("KERNEL_OK")
</pallas_src>

<mosaic_0001>
module attributes {stable_mosaic.version = 11 : i64} {
  func.func @_input_proj_kernel(%arg0: i32, %arg1: memref<16x32xf32, #tpu.memory_space<vmem>>, %arg2: memref<32x192xf32, #tpu.memory_space<vmem>>, %arg3: memref<1x192xf32, #tpu.memory_space<vmem>>, %arg4: memref<16x192xf32, #tpu.memory_space<vmem>>) attributes {dimension_semantics = [#tpu.dimension_semantics<parallel>], iteration_bounds = array<i64: 1>, scalar_prefetch = 0 : i64, scratch_operands = 0 : i64, tpu.core_type = #tpu.core_type<tc>, window_params = [{transform_indices = @transform_0, window_bounds = array<i64: 16, 32>}, {pipeline_mode = #tpu.pipeline_mode<synchronous>, transform_indices = @transform_1, window_bounds = array<i64: 32, 192>}, {pipeline_mode = #tpu.pipeline_mode<synchronous>, transform_indices = @transform_2, window_bounds = array<i64: 1, 192>}, {transform_indices = @transform_3, window_bounds = array<i64: 16, 192>}]} {
    %c0 = arith.constant 0 : index
    %c0_0 = arith.constant 0 : index
    %0 = vector.load %arg1[%c0, %c0_0] : memref<16x32xf32, #tpu.memory_space<vmem>>, vector<16x32xf32>
    %c0_1 = arith.constant 0 : index
    %c0_2 = arith.constant 0 : index
    %1 = vector.load %arg2[%c0_1, %c0_2] : memref<32x192xf32, #tpu.memory_space<vmem>>, vector<32x192xf32>
    %cst = arith.constant dense<0.000000e+00> : vector<16x192xf32>
    %2 = tpu.matmul %0, %1, %cst {dimension_numbers = #tpu.dot_dimension_numbers<[1], [0], [0], [1], [0, 0, 1, 1], [], []>, precision = #tpu.contract_precision<fp32>} : vector<16x32xf32>, vector<32x192xf32>, vector<16x192xf32> -> vector<16x192xf32>
    %c0_3 = arith.constant 0 : index
    %c0_4 = arith.constant 0 : index
    %3 = vector.load %arg3[%c0_3, %c0_4] : memref<1x192xf32, #tpu.memory_space<vmem>>, vector<1x192xf32>
    %4 = vector.broadcast %3 : vector<1x192xf32> to vector<16x192xf32>
    %5 = arith.addf %2, %4 : vector<16x192xf32>
    %c0_5 = arith.constant 0 : index
    %c0_6 = arith.constant 0 : index
    %6 = vector.load %arg4[%c0_5, %c0_6] : memref<16x192xf32, #tpu.memory_space<vmem>>, vector<16x192xf32>
    tpu.vector_store %arg4[%c0_5, %c0_6], %5 {strides = array<i32>} : memref<16x192xf32, #tpu.memory_space<vmem>>, vector<16x192xf32>,
    return
  }
  func.func @transform_0(%arg0: i32) -> (i32, i32) {
    %c0_i32 = arith.constant 0 : i32
    %c0_i32_0 = arith.constant 0 : i32
    return %arg0, %c0_i32 : i32, i32
  }
  func.func @transform_1(%arg0: i32) -> (i32, i32) {
    %c0_i32 = arith.constant 0 : i32
    %c0_i32_0 = arith.constant 0 : i32
    %c0_i32_1 = arith.constant 0 : i32
    return %c0_i32, %c0_i32_0 : i32, i32
  }
  func.func @transform_2(%arg0: i32) -> (i32, i32) {
    %c0_i32 = arith.constant 0 : i32
    %c0_i32_0 = arith.constant 0 : i32
    %c0_i32_1 = arith.constant 0 : i32
    return %c0_i32, %c0_i32_0 : i32, i32
  }
  func.func @transform_3(%arg0: i32) -> (i32, i32) {
    %c0_i32 = arith.constant 0 : i32
    %c0_i32_0 = arith.constant 0 : i32
    return %arg0, %c0_i32 : i32, i32
  }
}

</mosaic_0001>

<llo_original>
// kernel: tpu_custom_call.1
$region0: #{tpu_custom_call.1}
  #allocation0 [shape = 'u32[]', space=smem, size = 0x4, offset = 0x4, fixed_abs, tag = 'smem constant byte address 0x4 - core index']
  #allocation1 [shape = 'u32[72,128]{1,0:T(1,128)}', space=vmem, size = 0x9000, scoped, tag = 'internal scratch']
  %s0 = inlined_call_operand.hbm [shape: f32[16,32], index: 0, kind: input, shape index: {}]
  %s1 = inlined_call_operand.hbm [shape: f32[32,192], index: 1, kind: input, shape index: {}]
  %s2 = inlined_call_operand.hbm [shape: f32[1,192], index: 2, kind: input, shape index: {}]
  %s3 = inlined_call_operand.hbm [shape: f32[16,192], index: 3, kind: output, shape index: {}]
  %s4 = sld [smem:[#allocation0]]
  $region34: #{tpu_custom_call.1} parent=0
    _
  %s6 = ssub.s32 1, %s4
  %s7 = scalar_select 0, %s6, %s4
  $region1: #{tpu_custom_call.1} parent=0
    #allocation2 [shape = 'u8[8192]{0}', space=vmem, size = 0x2000, scoped, tag = 'input window, operand 0, single buffered']
    #allocation3 [shape = 's32[1]{0}', space=sflag, size = 0x4, scoped, tag = 'scoped memory for tpu_custom_call.1']
    #allocation4 [shape = 's32[1]{0}', space=sflag, size = 0x4, scoped, tag = 'scoped memory for tpu_custom_call.1']
    #allocation5 [shape = 'u8[32768]{0}', space=vmem, size = 0x8000, scoped, tag = 'input window, operand 1, single buffered']
    #allocation6 [shape = 's32[1]{0}', space=sflag, size = 0x4, scoped, tag = 'scoped memory for tpu_custom_call.1']
    #allocation7 [shape = 'u8[1024]{0}', space=vmem, size = 0x400, scoped, tag = 'input window, operand 2, single buffered']
    #allocation8 [shape = 'u8[16384]{0}', space=vmem, size = 0x4000, scoped, tag = 'output window, operand 0, single buffered']
    %8 = vsyncpa [#allocation3], 0
    %9 = vsyncpa [#allocation6], 0
    %10 = vsyncpa [#allocation4], 0
    // Predicated region
    $region2: #{tpu_custom_call.1} parent=1 // pred_check
      _
    $region3: #{tpu_custom_call.1} parent=1 // pred_check_branch
      %12 = sbr.rel (0) target = $region5
    $region4: #{tpu_custom_call.1} parent=1 // pred_region
      %14 = vsyncadd [#allocation3], 0
      %s15 = sshll.u32 %s0, 4
      %s16 = int_to_ptr.hbm [resolvable:$true] %s15
      %s17 = sshll.u32 [#allocation2], 4
      %s18 = int_to_ptr.vmem [resolvable:$true] %s17
      %23 = dma.hbm_to_vmem [thread:$0]  %s16, 256, %s18, [#allocation3], 128, 128, 8
    $region5: #{tpu_custom_call.1} parent=1 // pred_fallthru
      _
    // Predicated region
    $region6: #{tpu_custom_call.1} parent=1 // pred_check
      _
    $region7: #{tpu_custom_call.1} parent=1 // pred_check_branch
      %25 = sbr.rel (0) target = $region9
    $region8: #{tpu_custom_call.1} parent=1 // pred_region
      %27 = vsyncadd [#allocation6], 0
      %s28 = sshll.u32 %s1, 4
      %s29 = int_to_ptr.hbm [resolvable:$true] %s28
      %s30 = sshll.u32 [#allocation5], 4
      %s31 = int_to_ptr.vmem [resolvable:$true] %s30
      %36 = dma.hbm_to_vmem [thread:$0]  %s29, 1024, %s31, [#allocation6], 256, 256, 16
    $region9: #{tpu_custom_call.1} parent=1 // pred_fallthru
      _
    // Predicated region
    $region10: #{tpu_custom_call.1} parent=1 // pred_check
      _
    $region11: #{tpu_custom_call.1} parent=1 // pred_check_branch
      %38 = sbr.rel (0) target = $region13
    $region12: #{tpu_custom_call.1} parent=1 // pred_region
      %40 = vsyncadd [#allocation6], 0
      %s42 = sshll.u32 %s2, 4
      %s43 = int_to_ptr.hbm [resolvable:$true] %s42
      %s44 = sshll.u32 [#allocation7], 4
      %s45 = int_to_ptr.vmem [resolvable:$true] %s44
      %47 = dma.hbm_to_vmem [thread:$0]  %s43, 32, %s45, [#allocation6]
    $region13: #{tpu_custom_call.1} parent=1 // pred_fallthru
      _
    // Predicated region
    $region14: #{tpu_custom_call.1} parent=1 // pred_check
      _
    $region15: #{tpu_custom_call.1} parent=1 // pred_check_branch
      %49 = sbr.rel (0) target = $region17
    $region16: #{tpu_custom_call.1} parent=1 // pred_region
      %51 = dma.done [#allocation3], 256
    $region17: #{tpu_custom_call.1} parent=1 // pred_fallthru
      _
    // Predicated region
    $region18: #{tpu_custom_call.1} parent=1 // pred_check
      _
    $region19: #{tpu_custom_call.1} parent=1 // pred_check_branch
      %53 = sbr.rel (0) target = $region21
    $region20: #{tpu_custom_call.1} parent=1 // pred_region
      %55 = dma.done [#allocation6], 1024
    $region21: #{tpu_custom_call.1} parent=1 // pred_fallthru
      _
    // Predicated region
    $region22: #{tpu_custom_call.1} parent=1 // pred_check
      _
    $region23: #{tpu_custom_call.1} parent=1 // pred_check_branch
      %57 = sbr.rel (0) target = $region25
    $region24: #{tpu_custom_call.1} parent=1 // pred_region
      %59 = dma.done [#allocation6], 32
    $region25: #{tpu_custom_call.1} parent=1 // pred_fallthru
      _
    %v60 = vld [vmem:[#allocation2] sm:$0xff]
    %v61 = vld [vmem:[#allocation2 + $0x8] sm:$0xff]
    %v62 = vld [vmem:[#allocation5] sm:$0xff]
    %v63 = vld [vmem:[#allocation5 + $0x8] sm:$0xff]
    %v64 = vld [vmem:[#allocation5 + $0x10] sm:$0xff]
    %v65 = vld [vmem:[#allocation5 + $0x18] sm:$0xff]
    %v66 = vld [vmem:[#allocation5 + $0x20] sm:$0xff]
    %v67 = vld [vmem:[#allocation5 + $0x28] sm:$0xff]
    %v68 = vld [vmem:[#allocation5 + $0x30] sm:$0xff]
    %v69 = vld [vmem:[#allocation5 + $0x38] sm:$0xff]
    %v70 = vld [vmem:[#allocation7] sm:$0x3]
    %v72 = vperm.slane %v70, 0
    %v73 = vperm.slane %v70, 1
    %vm76 = vcmask 261120
    %v78 = vsel %vm76, %v60, 0
    %v81 = vsel %vm76, %v61, 0
    %83 = vmatpush.msra.mxu0 0.0
    %84 = vmatpush.msra.mxu0 0.0
    %85 = vmatpush.msra.mxu0 0.0
    %86 = vmatpush.msra.mxu0 0.0
    %87 = vmatpush.msra.mxu0 0.0
    %88 = vmatpush.msra.mxu0 0.0
    %89 = vmatpush.msra.mxu0 0.0
    %90 = vmatpush.msra.mxu0 0.0
    %91 = vmatpush.msra.mxu0 0.0
    %92 = vmatpush.msra.mxu0 0.0
    %93 = vmatpush.msra.mxu0 0.0
    %94 = vmatpush.msra.mxu0 0.0
    %v95 = vand.u32 %v68, 4294901760
    %96 = vmatpush.msra.mxu0 %v95
    %v97 = vand.u32 %v66, 4294901760
    %98 = vmatpush.msra.mxu0 %v97
    %v99 = vand.u32 %v64, 4294901760
    %100 = vmatpush.msra.mxu0 %v99
    %v101 = vand.u32 %v62, 4294901760
    %102 = vmatpush.msra.mxu0 %v101
    %v103 = vand.u32 %v78, 4294901760
    %v104 = vsub.f32 %v78, %v103
    %v105 = vand.u32 %v104, 4294901760
    %v106 = vsub.f32 %v104, %v105
    %v107 = vand.u32 %v106, 4294901760
    %108 = vmatmul.f32.gmra.mxu0 %v107
    %v109 = vpop.f32.mrf.mxu0
    %v110 = vadd.f32 %v72, %v109
    %v111 = vand.u32 %v81, 4294901760
    %v112 = vsub.f32 %v81, %v111
    %v113 = vand.u32 %v112, 4294901760
    %v114 = vsub.f32 %v112, %v113
    %v115 = vand.u32 %v114, 4294901760
    %116 = vmatmul.f32.gmra.mxu0 %v115
    %v117 = vpop.f32.mrf.mxu0
    %v118 = vadd.f32 %v72, %v117
    %119 = vdwg.mxu0
    %120 = vmatpush.msra.mxu0 0.0
    %121 = vmatpush.msra.mxu0 0.0
    %122 = vmatpush.msra.mxu0 0.0
    %123 = vmatpush.msra.mxu0 0.0
    %124 = vmatpush.msra.mxu0 0.0
    %125 = vmatpush.msra.mxu0 0.0
    %126 = vmatpush.msra.mxu0 0.0
    %127 = vmatpush.msra.mxu0 0.0
    %128 = vmatpush.msra.mxu0 0.0
    %129 = vmatpush.msra.mxu0 0.0
    %130 = vmatpush.msra.mxu0 0.0
    %131 = vmatpush.msra.mxu0 0.0
    %v132 = vand.u32 %v68, 4294901760
    %v133 = vsub.f32 %v68, %v132
    %v134 = vand.u32 %v133, 4294901760
    %v135 = vsub.f32 %v133, %v134
    %v136 = vand.u32 %v135, 4294901760
    %137 = vmatpush.msra.mxu0 %v136
    %v138 = vand.u32 %v66, 4294901760
    %v139 = vsub.f32 %v66, %v138
    %v140 = vand.u32 %v139, 4294901760
    %v141 = vsub.f32 %v139, %v140
    %v142 = vand.u32 %v141, 4294901760
    %143 = vmatpush.msra.mxu0 %v142
    %v144 = vand.u32 %v64, 4294901760
    %v145 = vsub.f32 %v64, %v144
    %v146 = vand.u32 %v145, 4294901760
    %v147 = vsub.f32 %v145, %v146
    %v148 = vand.u32 %v147, 4294901760
    %149 = vmatpush.msra.mxu0 %v148
    %v150 = vand.u32 %v62, 4294901760
    %v151 = vsub.f32 %v62, %v150
    %v152 = vand.u32 %v151, 4294901760
    %v153 = vsub.f32 %v151, %v152
    %v154 = vand.u32 %v153, 4294901760
    %155 = vmatpush.msra.mxu0 %v154
    %v156 = vand.u32 %v78, 4294901760
    %157 = vmatmul.f32.gmra.mxu0 %v156
    %v158 = vpop.f32.mrf.mxu0
    %v159 = vadd.f32 %v110, %v158
    %v160 = vand.u32 %v81, 4294901760
    %161 = vmatmul.f32.gmra.mxu0 %v160
    %v162 = vpop.f32.mrf.mxu0
    %v163 = vadd.f32 %v118, %v162
    %164 = vdwg.mxu0
    %165 = vmatpush.msra.mxu0 0.0
    %166 = vmatpush.msra.mxu0 0.0
    %167 = vmatpush.msra.mxu0 0.0
    %168 = vmatpush.msra.mxu0 0.0
    %169 = vmatpush.msra.mxu0 0.0
    %170 = vmatpush.msra.mxu0 0.0
    %171 = vmatpush.msra.mxu0 0.0
    %172 = vmatpush.msra.mxu0 0.0
    %173 = vmatpush.msra.mxu0 0.0
    %174 = vmatpush.msra.mxu0 0.0
    %175 = vmatpush.msra.mxu0 0.0
    %176 = vmatpush.msra.mxu0 0.0
    %v177 = vand.u32 %v68, 4294901760
    %v178 = vsub.f32 %v68, %v177
    %179 = vmatpush.msra.mxu0 %v178
    %v180 = vand.u32 %v66, 4294901760
    %v181 = vsub.f32 %v66, %v180
    %182 = vmatpush.msra.mxu0 %v181
    %v183 = vand.u32 %v64, 4294901760
    %v184 = vsub.f32 %v64, %v183
    %185 = vmatpush.msra.mxu0 %v184
    %v186 = vand.u32 %v62, 4294901760
    %v187 = vsub.f32 %v62, %v186
    %188 = vmatpush.msra.mxu0 %v187
    %v189 = vand.u32 %v78, 4294901760
    %v190 = vsub.f32 %v78, %v189
    %191 = vmatmul.f32.gmra.mxu0 %v190
    %v192 = vpop.f32.mrf.mxu0
    %v193 = vadd.f32 %v159, %v192
    %v194 = vand.u32 %v81, 4294901760
    %v195 = vsub.f32 %v81, %v194
    %196 = vmatmul.f32.gmra.mxu0 %v195
    %v197 = vpop.f32.mrf.mxu0
    %v198 = vadd.f32 %v163, %v197
    %199 = vdwg.mxu0
    %200 = vmatpush.msra.mxu0 0.0
    %201 = vmatpush.msra.mxu0 0.0
    %202 = vmatpush.msra.mxu0 0.0
    %203 = vmatpush.msra.mxu0 0.0
    %204 = vmatpush.msra.mxu0 0.0
    %205 = vmatpush.msra.mxu0 0.0
    %206 = vmatpush.msra.mxu0 0.0
    %207 = vmatpush.msra.mxu0 0.0
    %208 = vmatpush.msra.mxu0 0.0
    %209 = vmatpush.msra.mxu0 0.0
    %210 = vmatpush.msra.mxu0 0.0
    %211 = vmatpush.msra.mxu0 0.0
    %v212 = vand.u32 %v68, 4294901760
    %213 = vmatpush.msra.mxu0 %v212
    %v214 = vand.u32 %v66, 4294901760
    %215 = vmatpush.msra.mxu0 %v214
    %v216 = vand.u32 %v64, 4294901760
    %217 = vmatpush.msra.mxu0 %v216
    %v218 = vand.u32 %v62, 4294901760
    %219 = vmatpush.msra.mxu0 %v218
    %v220 = vand.u32 %v78, 4294901760
    %v221 = vsub.f32 %v78, %v220
    %v222 = vand.u32 %v221, 4294901760
    %223 = vmatmul.f32.gmra.mxu0 %v222
    %v224 = vpop.f32.mrf.mxu0
    %v225 = vadd.f32 %v193, %v224
    %v226 = vand.u32 %v81, 4294901760
    %v227 = vsub.f32 %v81, %v226
    %v228 = vand.u32 %v227, 4294901760
    %229 = vmatmul.f32.gmra.mxu0 %v228
    %v230 = vpop.f32.mrf.mxu0
    %v231 = vadd.f32 %v198, %v230
    %232 = vdwg.mxu0
    %233 = vmatpush.msra.mxu0 0.0
    %234 = vmatpush.msra.mxu0 0.0
    %235 = vmatpush.msra.mxu0 0.0
    %236 = vmatpush.msra.mxu0 0.0
    %237 = vmatpush.msra.mxu0 0.0
    %238 = vmatpush.msra.mxu0 0.0
    %239 = vmatpush.msra.mxu0 0.0
    %240 = vmatpush.msra.mxu0 0.0
    %241 = vmatpush.msra.mxu0 0.0
    %242 = vmatpush.msra.mxu0 0.0
    %243 = vmatpush.msra.mxu0 0.0
    %244 = vmatpush.msra.mxu0 0.0
    %v245 = vand.u32 %v68, 4294901760
    %v246 = vsub.f32 %v68, %v245
    %v247 = vand.u32 %v246, 4294901760
    %248 = vmatpush.msra.mxu0 %v247
    %v249 = vand.u32 %v66, 4294901760
    %v250 = vsub.f32 %v66, %v249
    %v251 = vand.u32 %v250, 4294901760
    %252 = vmatpush.msra.mxu0 %v251
    %v253 = vand.u32 %v64, 4294901760
    %v254 = vsub.f32 %v64, %v253
    %v255 = vand.u32 %v254, 4294901760
    %256 = vmatpush.msra.mxu0 %v255
    %v257 = vand.u32 %v62, 4294901760
    %v258 = vsub.f32 %v62, %v257
    %v259 = vand.u32 %v258, 4294901760
    %260 = vmatpush.msra.mxu0 %v259
    %v261 = vand.u32 %v78, 4294901760
    %262 = vmatmul.f32.gmra.mxu0 %v261
    %v263 = vpop.f32.mrf.mxu0
    %v264 = vadd.f32 %v225, %v263
    %v265 = vand.u32 %v81, 4294901760
    %266 = vmatmul.f32.gmra.mxu0 %v265
    %v267 = vpop.f32.mrf.mxu0
    %v268 = vadd.f32 %v231, %v267
    %269 = vdwg.mxu0
    %270 = vmatpush.msra.mxu0 0.0
    %271 = vmatpush.msra.mxu0 0.0
    %272 = vmatpush.msra.mxu0 0.0
    %273 = vmatpush.msra.mxu0 0.0
    %274 = vmatpush.msra.mxu0 0.0
    %275 = vmatpush.msra.mxu0 0.0
    %276 = vmatpush.msra.mxu0 0.0
    %277 = vmatpush.msra.mxu0 0.0
    %278 = vmatpush.msra.mxu0 0.0
    %279 = vmatpush.msra.mxu0 0.0
    %280 = vmatpush.msra.mxu0 0.0
    %281 = vmatpush.msra.mxu0 0.0
    %v282 = vand.u32 %v68, 4294901760
    %283 = vmatpush.msra.mxu0 %v282
    %v284 = vand.u32 %v66, 4294901760
    %285 = vmatpush.msra.mxu0 %v284
    %v286 = vand.u32 %v64, 4294901760
    %287 = vmatpush.msra.mxu0 %v286
    %v288 = vand.u32 %v62, 4294901760
    %289 = vmatpush.msra.mxu0 %v288
    %v290 = vand.u32 %v78, 4294901760
    %291 = vmatmul.f32.gmra.mxu0 %v290
    %v292 = vpop.f32.mrf.mxu0
    %v293 = vadd.f32 %v264, %v292
    %v294 = vand.u32 %v81, 4294901760
    %295 = vmatmul.f32.gmra.mxu0 %v294
    %v296 = vpop.f32.mrf.mxu0
    %v297 = vadd.f32 %v268, %v296
    %298 = vdwg.mxu0
    %299 = vmatpush.msra.mxu0 0.0
    %300 = vmatpush.msra.mxu0 0.0
    %301 = vmatpush.msra.mxu0 0.0
    %302 = vmatpush.msra.mxu0 0.0
    %303 = vmatpush.msra.mxu0 0.0
    %304 = vmatpush.msra.mxu0 0.0
    %305 = vmatpush.msra.mxu0 0.0
    %306 = vmatpush.msra.mxu0 0.0
    %307 = vmatpush.msra.mxu0 0.0
    %308 = vmatpush.msra.mxu0 0.0
    %309 = vmatpush.msra.mxu0 0.0
    %310 = vmatpush.msra.mxu0 0.0
    %v311 = vand.u32 %v69, 4294901760
    %312 = vmatpush.msra.mxu0 %v311
    %v313 = vand.u32 %v67, 4294901760
    %314 = vmatpush.msra.mxu0 %v313
    %v315 = vand.u32 %v65, 4294901760
    %316 = vmatpush.msra.mxu0 %v315
    %v317 = vand.u32 %v63, 4294901760
    %318 = vmatpush.msra.mxu0 %v317
    %v319 = vand.u32 %v78, 4294901760
    %v320 = vsub.f32 %v78, %v319
    %v321 = vand.u32 %v320, 4294901760
    %v322 = vsub.f32 %v320, %v321
    %v323 = vand.u32 %v322, 4294901760
    %324 = vmatmul.f32.gmra.mxu0 %v323
    %v325 = vpop.f32.mrf.mxu0
    %v326 = vadd.f32 %v73, %v325
    %v327 = vand.u32 %v81, 4294901760
    %v328 = vsub.f32 %v81, %v327
    %v329 = vand.u32 %v328, 4294901760
    %v330 = vsub.f32 %v328, %v329
    %v331 = vand.u32 %v330, 4294901760
    %332 = vmatmul.f32.gmra.mxu0 %v331
    %v333 = vpop.f32.mrf.mxu0
    %v334 = vadd.f32 %v73, %v333
    %335 = vdwg.mxu0
    %336 = vmatpush.msra.mxu0 0.0
    %337 = vmatpush.msra.mxu0 0.0
    %338 = vmatpush.msra.mxu0 0.0
    %339 = vmatpush.msra.mxu0 0.0
    %340 = vmatpush.msra.mxu0 0.0
    %341 = vmatpush.msra.mxu0 0.0
    %342 = vmatpush.msra.mxu0 0.0
    %343 = vmatpush.msra.mxu0 0.0
    %344 = vmatpush.msra.mxu0 0.0
    %345 = vmatpush.msra.mxu0 0.0
    %346 = vmatpush.msra.mxu0 0.0
    %347 = vmatpush.msra.mxu0 0.0
    %v348 = vand.u32 %v69, 4294901760
    %v349 = vsub.f32 %v69, %v348
    %v350 = vand.u32 %v349, 4294901760
    %v351 = vsub.f32 %v349, %v350
    %v352 = vand.u32 %v351, 4294901760
    %353 = vmatpush.msra.mxu0 %v352
    %v354 = vand.u32 %v67, 4294901760
    %v355 = vsub.f32 %v67, %v354
    %v356 = vand.u32 %v355, 4294901760
    %v357 = vsub.f32 %v355, %v356
    %v358 = vand.u32 %v357, 4294901760
    %359 = vmatpush.msra.mxu0 %v358
    %v360 = vand.u32 %v65, 4294901760
    %v361 = vsub.f32 %v65, %v360
    %v362 = vand.u32 %v361, 4294901760
    %v363 = vsub.f32 %v361, %v362
    %v364 = vand.u32 %v363, 4294901760
    %365 = vmatpush.msra.mxu0 %v364
    %v366 = vand.u32 %v63, 4294901760
    %v367 = vsub.f32 %v63, %v366
    %v368 = vand.u32 %v367, 4294901760
    %v369 = vsub.f32 %v367, %v368
    %v370 = vand.u32 %v369, 4294901760
    %371 = vmatpush.msra.mxu0 %v370
    %v372 = vand.u32 %v78, 4294901760
    %373 = vmatmul.f32.gmra.mxu0 %v372
    %v374 = vpop.f32.mrf.mxu0
    %v375 = vadd.f32 %v326, %v374
    %v376 = vand.u32 %v81, 4294901760
    %377 = vmatmul.f32.gmra.mxu0 %v376
    %v378 = vpop.f32.mrf.mxu0
    %v379 = vadd.f32 %v334, %v378
    %380 = vdwg.mxu0
    %381 = vmatpush.msra.mxu0 0.0
    %382 = vmatpush.msra.mxu0 0.0
    %383 = vmatpush.msra.mxu0 0.0
    %384 = vmatpush.msra.mxu0 0.0
    %385 = vmatpush.msra.mxu0 0.0
    %386 = vmatpush.msra.mxu0 0.0
    %387 = vmatpush.msra.mxu0 0.0
    %388 = vmatpush.msra.mxu0 0.0
    %389 = vmatpush.msra.mxu0 0.0
    %390 = vmatpush.msra.mxu0 0.0
    %391 = vmatpush.msra.mxu0 0.0
    %392 = vmatpush.msra.mxu0 0.0
    %v393 = vand.u32 %v69, 4294901760
    %v394 = vsub.f32 %v69, %v393
    %395 = vmatpush.msra.mxu0 %v394
    %v396 = vand.u32 %v67, 4294901760
    %v397 = vsub.f32 %v67, %v396
    %398 = vmatpush.msra.mxu0 %v397
    %v399 = vand.u32 %v65, 4294901760
    %v400 = vsub.f32 %v65, %v399
    %401 = vmatpush.msra.mxu0 %v400
    %v402 = vand.u32 %v63, 4294901760
    %v403 = vsub.f32 %v63, %v402
    %404 = vmatpush.msra.mxu0 %v403
    %v405 = vand.u32 %v78, 4294901760
    %v406 = vsub.f32 %v78, %v405
    %407 = vmatmul.f32.gmra.mxu0 %v406
    %v408 = vpop.f32.mrf.mxu0
    %v409 = vadd.f32 %v375, %v408
    %v410 = vand.u32 %v81, 4294901760
    %v411 = vsub.f32 %v81, %v410
    %412 = vmatmul.f32.gmra.mxu0 %v411
    %v413 = vpop.f32.mrf.mxu0
    %v414 = vadd.f32 %v379, %v413
    %415 = vdwg.mxu0
    %416 = vmatpush.msra.mxu0 0.0
    %417 = vmatpush.msra.mxu0 0.0
    %418 = vmatpush.msra.mxu0 0.0
    %419 = vmatpush.msra.mxu0 0.0
    %420 = vmatpush.msra.mxu0 0.0
    %421 = vmatpush.msra.mxu0 0.0
    %422 = vmatpush.msra.mxu0 0.0
    %423 = vmatpush.msra.mxu0 0.0
    %424 = vmatpush.msra.mxu0 0.0
    %425 = vmatpush.msra.mxu0 0.0
    %426 = vmatpush.msra.mxu0 0.0
    %427 = vmatpush.msra.mxu0 0.0
    %v428 = vand.u32 %v69, 4294901760
    %429 = vmatpush.msra.mxu0 %v428
    %v430 = vand.u32 %v67, 4294901760
    %431 = vmatpush.msra.mxu0 %v430
    %v432 = vand.u32 %v65, 4294901760
    %433 = vmatpush.msra.mxu0 %v432
    %v434 = vand.u32 %v63, 4294901760
    %435 = vmatpush.msra.mxu0 %v434
    %v436 = vand.u32 %v78, 4294901760
    %v437 = vsub.f32 %v78, %v436
    %v438 = vand.u32 %v437, 4294901760
    %439 = vmatmul.f32.gmra.mxu0 %v438
    %v440 = vpop.f32.mrf.mxu0
    %v441 = vadd.f32 %v409, %v440
    %v442 = vand.u32 %v81, 4294901760
    %v443 = vsub.f32 %v81, %v442
    %v444 = vand.u32 %v443, 4294901760
    %445 = vmatmul.f32.gmra.mxu0 %v444
    %v446 = vpop.f32.mrf.mxu0
    %v447 = vadd.f32 %v414, %v446
    %448 = vdwg.mxu0
    %449 = vmatpush.msra.mxu0 0.0
    %450 = vmatpush.msra.mxu0 0.0
    %451 = vmatpush.msra.mxu0 0.0
    %452 = vmatpush.msra.mxu0 0.0
    %453 = vmatpush.msra.mxu0 0.0
    %454 = vmatpush.msra.mxu0 0.0
    %455 = vmatpush.msra.mxu0 0.0
    %456 = vmatpush.msra.mxu0 0.0
    %457 = vmatpush.msra.mxu0 0.0
    %458 = vmatpush.msra.mxu0 0.0
    %459 = vmatpush.msra.mxu0 0.0
    %460 = vmatpush.msra.mxu0 0.0
    %v461 = vand.u32 %v69, 4294901760
    %v462 = vsub.f32 %v69, %v461
    %v463 = vand.u32 %v462, 4294901760
    %464 = vmatpush.msra.mxu0 %v463
    %v465 = vand.u32 %v67, 4294901760
    %v466 = vsub.f32 %v67, %v465
    %v467 = vand.u32 %v466, 4294901760
    %468 = vmatpush.msra.mxu0 %v467
    %v469 = vand.u32 %v65, 4294901760
    %v470 = vsub.f32 %v65, %v469
    %v471 = vand.u32 %v470, 4294901760
    %472 = vmatpush.msra.mxu0 %v471
    %v473 = vand.u32 %v63, 4294901760
    %v474 = vsub.f32 %v63, %v473
    %v475 = vand.u32 %v474, 4294901760
    %476 = vmatpush.msra.mxu0 %v475
    %v477 = vand.u32 %v78, 4294901760
    %478 = vmatmul.f32.gmra.mxu0 %v477
    %v479 = vpop.f32.mrf.mxu0
    %v480 = vadd.f32 %v441, %v479
    %v481 = vand.u32 %v81, 4294901760
    %482 = vmatmul.f32.gmra.mxu0 %v481
    %v483 = vpop.f32.mrf.mxu0
    %v484 = vadd.f32 %v447, %v483
    %485 = vdwg.mxu0
    %486 = vmatpush.msra.mxu0 0.0
    %487 = vmatpush.msra.mxu0 0.0
    %488 = vmatpush.msra.mxu0 0.0
    %489 = vmatpush.msra.mxu0 0.0
    %490 = vmatpush.msra.mxu0 0.0
    %491 = vmatpush.msra.mxu0 0.0
    %492 = vmatpush.msra.mxu0 0.0
    %493 = vmatpush.msra.mxu0 0.0
    %494 = vmatpush.msra.mxu0 0.0
    %495 = vmatpush.msra.mxu0 0.0
    %496 = vmatpush.msra.mxu0 0.0
    %497 = vmatpush.msra.mxu0 0.0
    %v498 = vand.u32 %v69, 4294901760
    %499 = vmatpush.msra.mxu0 %v498
    %v500 = vand.u32 %v67, 4294901760
    %501 = vmatpush.msra.mxu0 %v500
    %v502 = vand.u32 %v65, 4294901760
    %503 = vmatpush.msra.mxu0 %v502
    %v504 = vand.u32 %v63, 4294901760
    %505 = vmatpush.msra.mxu0 %v504
    %v506 = vand.u32 %v78, 4294901760
    %507 = vmatmul.f32.gmra.mxu0 %v506
    %v508 = vpop.f32.mrf.mxu0
    %v509 = vadd.f32 %v480, %v508
    %v510 = vand.u32 %v81, 4294901760
    %511 = vmatmul.f32.gmra.mxu0 %v510
    %v512 = vpop.f32.mrf.mxu0
    %v513 = vadd.f32 %v484, %v512
    %514 = vdwg.mxu0
    %515 = vst [vmem:[#allocation8] sm:$0xff] %v293
    %vm516 = vcmask 523264
    %517 = vst.msk [vmem:[#allocation8 + $0x8] sm:$0xff] %vm516, %v509
    %518 = vst [vmem:[#allocation8 + $0x10] sm:$0xff] %v297
    %519 = vst.msk [vmem:[#allocation8 + $0x18] sm:$0xff] %vm516, %v513
    // Predicated region
    $region26: #{tpu_custom_call.1} parent=1 // pred_check
      _
    $region27: #{tpu_custom_call.1} parent=1 // pred_check_branch
      %521 = sbr.rel (0) target = $region29
    $region28: #{tpu_custom_call.1} parent=1 // pred_region
      %523 = vsyncadd [#allocation4], 0
      %s524 = sshll.u32 [#allocation8], 4
      %s525 = int_to_ptr.vmem [resolvable:$true] %s524
      %s526 = sshll.u32 %s3, 4
      %s527 = int_to_ptr.hbm [resolvable:$true] %s526
      %532 = dma.vmem_to_hbm [thread:$0]  %s525, 512, %s527, [#allocation4], 256, 256, 16
    $region29: #{tpu_custom_call.1} parent=1 // pred_fallthru
      _
    // Predicated region
    $region30: #{tpu_custom_call.1} parent=1 // pred_check
      _
    $region31: #{tpu_custom_call.1} parent=1 // pred_check_branch
      %534 = sbr.rel (0) target = $region33
    $region32: #{tpu_custom_call.1} parent=1 // pred_region
      %536 = dma.done [#allocation4], 512
    $region33: #{tpu_custom_call.1} parent=1 // pred_fallthru
      _
    %537 = vsyncpa [#allocation3], 1
    %538 = vsyncpa [#allocation6], 1
    %539 = vsyncpa [#allocation4], 1

</llo_original>
